<compile_context>
chip_gen: v5e
topology: v5e:2x2
jax: 0.10.0
libtpu: 0.0.40
codegen_flags: <defaults>
</compile_context>

<pallas_src>
import functools

import jax
import jax.numpy as jnp
from jax.experimental import pallas as pl
from jax.experimental.pallas import tpu as pltpu

LANE = 128
SUBLANE = 8


def _tracker_kernel(x_ref, out_ref, *, tr, rows, tiles_per_split):
    """Accumulate vreg-shaped partial sum / sum-of-squares into the resident output block.

    out_ref block: (1, 2, 8, 128) f32 -> [split, {sum, sum_sq}, sublane, lane] partials.
    """
    c = pl.program_id(0)          # split ("core") index      -- parallel axis
    i = pl.program_id(1)          # tile index within a split -- arbitrary axis

    @pl.when(i == 0)
    def _():
        out_ref[...] = jnp.zeros_like(out_ref)

    # Logical (unclamped) tile index -> global row offset of this tile.  The
    # index_map clamps the DMA so it never starts past the array; here we mask
    # rows that are logically past the end (Pallas does NOT zero-fill
    # out-of-bounds block reads).
    row0 = (c * tiles_per_split + i) * tr
    row_ids = row0 + jax.lax.broadcasted_iota(jnp.int32, (tr, 1), 0)
    valid = row_ids < rows                                        # (tr, 1)

    # Native-dtype load, f32 cast + mask on the VPU (hidden under the DMA).
    xb = jnp.where(valid, x_ref[...].astype(jnp.float32), 0.0)    # (tr, 128)
    xb3 = xb.reshape(tr // SUBLANE, SUBLANE, LANE)                 # vreg-aligned view

    # Pure-VALU accumulation of (8,128) partials: no per-step XLU reduce and no
    # serial scalar read-modify-write between grid steps.
    out_ref[0, 0] += jnp.sum(xb3, axis=0)
    out_ref[0, 1] += jnp.sum(xb3 * xb3, axis=0)


def tg_tracker_forward(x, *, tr=1024, num_splits=2):
    """Returns (x, magnitude, intensity) -- TGTracker.forward semantics, where
    magnitude/intensity are the scalars magdata(x) would record."""
    n = int(x.size)
    flat = x.reshape(-1)                       # native dtype; no wrapper-side cast
    rem = n % LANE
    if rem:
        # Rare fallback (element count not a multiple of 128): one small pad so the
        # data views as (rows, 128).  Padded zeros contribute 0 to the sums; the
        # true element count n is used for the means.
        flat = jnp.concatenate([flat, jnp.zeros((LANE - rem,), dtype=flat.dtype)])
    rows = flat.size // LANE
    x2d = flat.reshape(rows, LANE)

    # Big row tiles amortize the ~0.35us per-grid-step overhead, but never bigger
    # than the (sublane-rounded) array.  (1024, 128) f32 = 512 KiB per buffer,
    # ~1 MiB double-buffered: far under the scoped-VMEM limit on v5e/v6e/v7x.
    tr = max(SUBLANE, min(tr, ((rows + SUBLANE - 1) // SUBLANE) * SUBLANE))
    n_tiles = pl.cdiv(rows, tr)

    # Leading "parallel" axis lets v7x shard the row-tile range across its two
    # TensorCores; on single-core chips it is just a tiny outer loop.
    num_splits = num_splits if n_tiles >= num_splits else 1
    tiles_per_split = pl.cdiv(n_tiles, num_splits)

    def x_index_map(c, i):
        tile = c * tiles_per_split + i
        # Clamp so the DMA never starts past the array; the kernel masks the
        # logically out-of-range rows to zero.
        return (jnp.minimum(tile, n_tiles - 1), 0)

    partials = pl.pallas_call(
        functools.partial(_tracker_kernel, tr=tr, rows=rows,
                          tiles_per_split=tiles_per_split),
        out_shape=jax.ShapeDtypeStruct((num_splits, 2, SUBLANE, LANE), jnp.float32),
        grid_spec=pltpu.PrefetchScalarGridSpec(
            num_scalar_prefetch=0,
            grid=(num_splits, tiles_per_split),
            in_specs=[pl.BlockSpec((tr, LANE), x_index_map)],
            out_specs=pl.BlockSpec((1, 2, SUBLANE, LANE),
                                   lambda c, i: (c, 0, 0, 0)),
        ),
        compiler_params=pltpu.CompilerParams(
            dimension_semantics=("parallel", "arbitrary")),
    )(x2d)

    # Tiny (<= 8 KiB) cross-split / cross-lane combine + epilogue in plain JAX.
    totals = jnp.sum(partials, axis=(0, 2, 3))     # [sum(x), sum(x^2)]
    inv_n = 1.0 / n
    m1 = totals[0] * inv_n                         # moment_1 = mean(x)
    m2 = totals[1] * inv_n                         # moment_2 = mean(x**2)
    magnitude = jnp.sqrt(m2)
    intensity = (m1 * m1) / m2
    # grad_record(x, cb) is identity in the forward pass: return x unchanged.
    return x, magnitude, intensity


if __name__ == "__main__":
    key = jax.random.PRNGKey(0)
    # Small NCHW-ish input: batch=2, channels=4, spatial=16x16.
    x = jax.random.normal(key, (2, 4, 16, 16), dtype=jnp.float32) + 0.5

    out_x, mag, intn = tg_tracker_forward(x)
    out_x = jax.block_until_ready(out_x)
    mag = jax.block_until_ready(mag)
    intn = jax.block_until_ready(intn)

    # Pure-JAX reference of magdata().
    m1 = jnp.mean(x)
    m2 = jnp.mean(x * x)
    ref_mag = jnp.sqrt(m2)
    ref_intn = m1 * m1 / m2

    assert jnp.allclose(out_x, x), "forward must return x unchanged"
    assert jnp.allclose(mag, ref_mag, rtol=1e-5, atol=1e-6), (mag, ref_mag)
    assert jnp.allclose(intn, ref_intn, rtol=1e-5, atol=1e-6), (intn, ref_intn)

    print("KERNEL_OK")
</pallas_src>

<mosaic_0001>
module attributes {stable_mosaic.version = 11 : i64} {
  func.func @_tracker_kernel(%arg0: i32, %arg1: i32, %arg2: memref<16x128xf32, #tpu.memory_space<vmem>>, %arg3: memref<1x2x8x128xf32, #tpu.memory_space<vmem>>) attributes {dimension_semantics = [#tpu.dimension_semantics<parallel>, #tpu.dimension_semantics<arbitrary>], iteration_bounds = array<i64: 1, 1>, scalar_prefetch = 0 : i64, scratch_operands = 0 : i64, tpu.core_type = #tpu.core_type<tc>, window_params = [{transform_indices = @transform_0, window_bounds = array<i64: 16, 128>}, {transform_indices = @transform_1, window_bounds = array<i64: 1, 2, 8, 128>}]} {
    %c0_i32 = arith.constant 0 : i32
    %0 = arith.cmpi eq, %arg1, %c0_i32 : i32
    %1 = arith.extui %0 : i1 to i32
    %c0_i32_0 = arith.constant 0 : i32
    %2 = arith.cmpi ne, %1, %c0_i32_0 : i32
    scf.if %2 {
      %cst_20 = arith.constant 0.000000e+00 : f32
      %32 = vector.broadcast %cst_20 : f32 to vector<1x2x8x128xf32>
      %c0_21 = arith.constant 0 : index
      %c0_22 = arith.constant 0 : index
      %c0_23 = arith.constant 0 : index
      %c0_24 = arith.constant 0 : index
      %33 = vector.load %arg3[%c0_21, %c0_22, %c0_23, %c0_24] : memref<1x2x8x128xf32, #tpu.memory_space<vmem>>, vector<1x2x8x128xf32>
      tpu.vector_store %arg3[%c0_21, %c0_22, %c0_23, %c0_24], %32 {strides = array<i32>} : memref<1x2x8x128xf32, #tpu.memory_space<vmem>>, vector<1x2x8x128xf32>,
    } else {
    }
    %c1_i32 = arith.constant 1 : i32
    %3 = arith.muli %arg0, %c1_i32 : i32
    %4 = arith.addi %3, %arg1 : i32
    %c16_i32 = arith.constant 16 : i32
    %5 = arith.muli %4, %c16_i32 : i32
    %6 = tpu.iota {dimensions = array<i32: 0>} : vector<16x1xi32>
    %7 = vector.broadcast %5 : i32 to vector<16x1xi32>
    %8 = arith.addi %7, %6 : vector<16x1xi32>
    %c16_i32_1 = arith.constant 16 : i32
    %9 = vector.broadcast %c16_i32_1 : i32 to vector<16x1xi32>
    %10 = arith.cmpi slt, %8, %9 : vector<16x1xi32>
    %c0 = arith.constant 0 : index
    %c0_2 = arith.constant 0 : index
    %11 = vector.load %arg2[%c0, %c0_2] : memref<16x128xf32, #tpu.memory_space<vmem>>, vector<16x128xf32>
    %cst = arith.constant 0.000000e+00 : f32
    %12 = vector.shape_cast %10 : vector<16x1xi1> to vector<16x1xi1>
    %13 = vector.broadcast %12 : vector<16x1xi1> to vector<16x128xi1>
    %14 = vector.broadcast %cst : f32 to vector<16x128xf32>
    %15 = arith.select %13, %11, %14 : vector<16x128xi1>, vector<16x128xf32>
    %16 = vector.shape_cast %15 : vector<16x128xf32> to vector<2x8x128xf32>
    %c0_3 = arith.constant 0 : index
    %c0_4 = arith.constant 0 : index
    %c0_5 = arith.constant 0 : index
    %c0_6 = arith.constant 0 : index
    %17 = vector.load %arg3[%c0_3, %c0_4, %c0_5, %c0_6] : memref<1x2x8x128xf32, #tpu.memory_space<vmem>>, vector<1x1x8x128xf32>
    %18 = vector.shape_cast %17 : vector<1x1x8x128xf32> to vector<8x128xf32>
    %cst_7 = arith.constant dense<0.000000e+00> : vector<8x128xf32>
    %19 = vector.multi_reduction <add>, %16, %cst_7 [0] : vector<2x8x128xf32> to vector<8x128xf32>
    %20 = arith.addf %18, %19 : vector<8x128xf32>
    %c0_8 = arith.constant 0 : index
    %c0_9 = arith.constant 0 : index
    %c0_10 = arith.constant 0 : index
    %c0_11 = arith.constant 0 : index
    %21 = vector.load %arg3[%c0_8, %c0_9, %c0_10, %c0_11] : memref<1x2x8x128xf32, #tpu.memory_space<vmem>>, vector<1x1x8x128xf32>
    %22 = vector.shape_cast %21 : vector<1x1x8x128xf32> to vector<8x128xf32>
    %23 = vector.shape_cast %20 : vector<8x128xf32> to vector<1x1x8x128xf32>
    tpu.vector_store %arg3[%c0_8, %c0_9, %c0_10, %c0_11], %23 {strides = array<i32>} : memref<1x2x8x128xf32, #tpu.memory_space<vmem>>, vector<1x1x8x128xf32>,
    %c0_12 = arith.constant 0 : index
    %c1 = arith.constant 1 : index
    %c0_13 = arith.constant 0 : index
    %c0_14 = arith.constant 0 : index
    %24 = vector.load %arg3[%c0_12, %c1, %c0_13, %c0_14] : memref<1x2x8x128xf32, #tpu.memory_space<vmem>>, vector<1x1x8x128xf32>
    %25 = vector.shape_cast %24 : vector<1x1x8x128xf32> to vector<8x128xf32>
    %26 = arith.mulf %16, %16 : vector<2x8x128xf32>
    %cst_15 = arith.constant dense<0.000000e+00> : vector<8x128xf32>
    %27 = vector.multi_reduction <add>, %26, %cst_15 [0] : vector<2x8x128xf32> to vector<8x128xf32>
    %28 = arith.addf %25, %27 : vector<8x128xf32>
    %c0_16 = arith.constant 0 : index
    %c1_17 = arith.constant 1 : index
    %c0_18 = arith.constant 0 : index
    %c0_19 = arith.constant 0 : index
    %29 = vector.load %arg3[%c0_16, %c1_17, %c0_18, %c0_19] : memref<1x2x8x128xf32, #tpu.memory_space<vmem>>, vector<1x1x8x128xf32>
    %30 = vector.shape_cast %29 : vector<1x1x8x128xf32> to vector<8x128xf32>
    %31 = vector.shape_cast %28 : vector<8x128xf32> to vector<1x1x8x128xf32>
    tpu.vector_store %arg3[%c0_16, %c1_17, %c0_18, %c0_19], %31 {strides = array<i32>} : memref<1x2x8x128xf32, #tpu.memory_space<vmem>>, vector<1x1x8x128xf32>,
    return
  }
  func.func @transform_0(%arg0: i32, %arg1: i32) -> (i32, i32) {
    %c1_i32 = arith.constant 1 : i32
    %0 = arith.muli %arg0, %c1_i32 : i32
    %1 = arith.addi %0, %arg1 : i32
    %c0_i32 = arith.constant 0 : i32
    %2 = arith.minsi %1, %c0_i32 : i32
    %c0_i32_0 = arith.constant 0 : i32
    %c0_i32_1 = arith.constant 0 : i32
    return %2, %c0_i32_0 : i32, i32
  }
  func.func @transform_1(%arg0: i32, %arg1: i32) -> (i32, i32, i32, i32) {
    %c0_i32 = arith.constant 0 : i32
    %c0_i32_0 = arith.constant 0 : i32
    %c0_i32_1 = arith.constant 0 : i32
    %c0_i32_2 = arith.constant 0 : i32
    return %arg0, %c0_i32, %c0_i32_0, %c0_i32_1 : i32, i32, i32, i32
  }
}

</mosaic_0001>

<llo_original>
// kernel: tpu_custom_call.1
$region0: #{tpu_custom_call.1}
  #allocation0 [shape = 'u32[]', space=smem, size = 0x4, offset = 0x4, fixed_abs, tag = 'smem constant byte address 0x4 - core index']
  #allocation1 [shape = 'u32[72,128]{1,0:T(1,128)}', space=vmem, size = 0x9000, scoped, tag = 'internal scratch']
  %s0 = inlined_call_operand.hbm [shape: f32[16,128], index: 0, kind: input, shape index: {}]
  %s1 = inlined_call_operand.hbm [shape: f32[1,2,8,128], index: 1, kind: output, shape index: {}]
  %s2 = sld [smem:[#allocation0]]
  $region22: #{tpu_custom_call.1} parent=0
    _
  %s4 = ssub.s32 1, %s2
  %s5 = scalar_select 0, %s4, %s2
  $region1: #{tpu_custom_call.1} parent=0
    #allocation2 [shape = 'u8[8192]{0}', space=vmem, size = 0x2000, scoped, tag = 'input window, operand 0, single buffered']
    #allocation3 [shape = 's32[1]{0}', space=sflag, size = 0x4, scoped, tag = 'scoped memory for tpu_custom_call.1']
    #allocation4 [shape = 's32[1]{0}', space=sflag, size = 0x4, scoped, tag = 'scoped memory for tpu_custom_call.1']
    #allocation5 [shape = 'u8[8192]{0}', space=vmem, size = 0x2000, scoped, tag = 'output window, operand 0, single buffered']
    %6 = vsyncpa [#allocation3], 0
    %7 = vsyncpa [#allocation4], 0
    // Predicated region
    $region2: #{tpu_custom_call.1} parent=1 // pred_check
      _
    $region3: #{tpu_custom_call.1} parent=1 // pred_check_branch
      %9 = sbr.rel (0) target = $region5
    $region4: #{tpu_custom_call.1} parent=1 // pred_region
      %s10 = sadd.s32 0, 0
      %p11 = scmp.lt.s32.totalorder %s10, 0
      %s12 = scalar_select %p11, %s10, 0
      %s13 = smul.u32 2, %s12
      %15 = vsyncadd [#allocation3], 0
      %s16 = smul.addr %s13, 8
      %s17 = scalar_lea.hbm %s0, %s16
      %s18 = sshll.u32 %s17, 4
      %s19 = int_to_ptr.hbm [resolvable:$true] %s18
      %s20 = sshll.u32 [#allocation2], 4
      %s21 = int_to_ptr.vmem [resolvable:$true] %s20
      %26 = dma.hbm_to_vmem [thread:$0]  %s19, 256, %s21, [#allocation3], 128, 128, 8
    $region5: #{tpu_custom_call.1} parent=1 // pred_fallthru
      _
    // Predicated region
    $region6: #{tpu_custom_call.1} parent=1 // pred_check
      _
    $region7: #{tpu_custom_call.1} parent=1 // pred_check_branch
      %28 = sbr.rel (0) target = $region9
    $region8: #{tpu_custom_call.1} parent=1 // pred_region
      %30 = dma.done [#allocation3], 256
    $region9: #{tpu_custom_call.1} parent=1 // pred_fallthru
      _
    %s31 = sadd.s32 0, 0
    %p32 = scmp.lt.s32.totalorder %s31, 0
    %s33 = scalar_select %p32, %s31, 0
    %s34 = smul.u32 2, %s33
    %p35 = scmp.eq.s32.totalorder 0, 0
    // Predicated region
    $region10: #{tpu_custom_call.1} parent=1 // pred_check
      %p36 = pneg %p35
    $region11: #{tpu_custom_call.1} parent=1 // pred_check_branch
      %38 = sbr.rel (%p36) target = $region13
    $region12: #{tpu_custom_call.1} parent=1 // pred_region
      %39 = vst [vmem:[#allocation5] sm:$0xff] 0.0
      %40 = vst [vmem:[#allocation5 + $0x8] sm:$0xff] 0.0
    $region13: #{tpu_custom_call.1} parent=1 // pred_fallthru
      _
    %s41 = sadd.s32 0, 0
    %s42 = smul.u32 %s41, 16
    %v43 = vlaneseq
    %v44 = vshrl.u32 %v43, 7
    %v45 = vadd.s32 %v44, 8
    %v46 = vstv %s42
    %v47 = vadd.s32 %v46, %v44
    %v48 = vadd.s32 %v46, %v45
    %vm49 = vcmp.lt.s32.totalorder %v47, 16
    %vm50 = vcmp.lt.s32.totalorder %v48, 16
    %v51 = vld [vmem:[#allocation2] sm:$0xff]
    %v52 = vld [vmem:[#allocation2 + $0x8] sm:$0xff]
    %v53 = vsel %vm49, 1, 0
    %v54 = vsel %vm50, 1, 0
    %vm55 = vcmp.eq.s32.totalorder %v53, 1
    %vm56 = vcmp.eq.s32.totalorder %v54, 1
    %v57 = vsel %vm55, %v51, 0.0
    %v58 = vsel %vm56, %v52, 0.0
    %v59 = vld [vmem:[#allocation5] sm:$0xff]
    %v60 = vadd.f32 %v57, %v58
    %v61 = vadd.f32 %v59, %v60
    %62 = vst [vmem:[#allocation5] sm:$0xff] %v61
    %s63 = scalar_lea.vmem [#allocation5], 8
    %v64 = vld [vmem:[%s63] sm:$0xff]
    %v65 = vmul.f32 %v57, %v57
    %v66 = vmul.f32 %v58, %v58
    %v67 = vadd.f32 %v65, %v66
    %v68 = vadd.f32 %v64, %v67
    %69 = vst [vmem:[%s63] sm:$0xff] %v68
    // Predicated region
    $region14: #{tpu_custom_call.1} parent=1 // pred_check
      _
    $region15: #{tpu_custom_call.1} parent=1 // pred_check_branch
      %71 = sbr.rel (0) target = $region17
    $region16: #{tpu_custom_call.1} parent=1 // pred_region
      %73 = vsyncadd [#allocation4], 0
      %s74 = sshll.u32 [#allocation5], 4
      %s75 = int_to_ptr.vmem [resolvable:$true] %s74
      %s76 = sshll.u32 %s1, 4
      %s77 = int_to_ptr.hbm [resolvable:$true] %s76
      %82 = dma.vmem_to_hbm [thread:$0]  %s75, 256, %s77, [#allocation4], 128, 128, 8
    $region17: #{tpu_custom_call.1} parent=1 // pred_fallthru
      _
    // Predicated region
    $region18: #{tpu_custom_call.1} parent=1 // pred_check
      _
    $region19: #{tpu_custom_call.1} parent=1 // pred_check_branch
      %84 = sbr.rel (0) target = $region21
    $region20: #{tpu_custom_call.1} parent=1 // pred_region
      %86 = dma.done [#allocation4], 256
    $region21: #{tpu_custom_call.1} parent=1 // pred_fallthru
      _
    %87 = vsyncpa [#allocation3], 1
    %88 = vsyncpa [#allocation4], 1

</llo_original>
